<compile_context>
chip_gen: v6e
topology: v6e:2x2x1
jax: 0.10.0
libtpu: 0.0.40
codegen_flags: <defaults>
</compile_context>

<pallas_src>
import numpy as np
import jax
import jax.numpy as jnp
from jax.experimental import pallas as pl
from jax.experimental.pallas import tpu as pltpu


def _round_up(n: int, m: int) -> int:
    return ((n + m - 1) // m) * m


# ------------------------------ Pallas kernel --------------------------------

def _make_cheb_conv_kernel(K: int, Finp: int, Bt: int, Fout: int, KFp: int):
    """Fused Chebyshev recurrence + linear projection for Bt batch elements.

    Per grid step (all in VMEM, V on the lane axis):
        Z_0 = x_block                                  (Bt*Finp, Vp)
        Z_k = 2 * Z_{k-1} @ L^T - Z_{k-2}
        y   = einsum('bof,bfv->bov', W, Z_all)         (Bt, Fout, Vp)
    """
    rows = Bt * Finp

    def kernel(x_ref, lt_ref, w_ref, o_ref, z_ref):
        Vp = x_ref.shape[-1]
        lt = lt_ref[...]                                      # (Vp, Vp), resident

        # ---- Chebyshev recurrence on a (Bt*Finp, Vp) slab (M = Bt*Finp) ----
        z_km1 = x_ref[...].reshape(rows, Vp)                  # Z_0, free reshape
        z_ref[:, 0:Finp, :] = x_ref[...]
        z_km2 = None
        for k in range(1, K):                                 # K static -> unrolled
            zk = jnp.dot(z_km1, lt, preferred_element_type=jnp.float32)
            if k > 1:
                zk = 2.0 * zk - z_km2
            z_ref[:, k * Finp:(k + 1) * Finp, :] = zk.reshape(Bt, Finp, Vp)
            z_km2, z_km1 = z_km1, zk

        # ---- fused projection: one batched matmul, contraction = K*Finp ----
        wb = jnp.broadcast_to(w_ref[...][None], (Bt, Fout, KFp))
        zb = z_ref[...]                                       # (Bt, K*Finp, Vp)
        o_ref[...] = jnp.einsum(
            'bof,bfv->bov', wb, zb,
            preferred_element_type=jnp.float32).astype(o_ref.dtype)

    return kernel


# -------------------------------- wrapper -------------------------------------

def cheb_conv_forward(x, L_rescaled, weight, K, *, batch_block=None):
    """ChebConv forward.

    x          : (B, Fin, V)   float32
    L_rescaled : (V, V)        float32, already rescaled (2L/lmax - I)
    weight     : (Fout, K*Fin) float32 (nn.Linear layout, column = fin*K + k)
    returns    : (B, Fout, V)  float32
    """
    B, Fin, V = x.shape
    Fout = weight.shape[0]

    Vp = _round_up(V, 128)      # lane axis
    Finp = _round_up(Fin, 8)    # sublane axis -> all in-kernel reshapes are free
    KFp = K * Finp

    # Batch block size: fill the MXU M-dim (target ~256 rows) while keeping at
    # least 2 grid steps when possible (pipeline overlap / megacore sharding).
    if batch_block is None:
        bt = max(1, 256 // Finp)
        bt = min(bt, B)
        if B >= 2 and -(-B // bt) < 2:
            bt = max(1, B // 2)
    else:
        bt = max(1, min(batch_block, B))
    Bp = _round_up(B, bt)
    steps = Bp // bt

    # Zero padding is exact: padded fin rows and padded v rows/cols of L^T stay
    # zero through the recurrence, padded batches/weights are zero and sliced off.
    x_p = jnp.pad(x, ((0, Bp - B), (0, Finp - Fin), (0, Vp - V)))
    lt_p = jnp.pad(jnp.transpose(L_rescaled), ((0, Vp - V), (0, Vp - V)))
    # nn.Linear weight columns are ordered fin*K + k -> (Fout, K, Finp) -> (Fout, K*Finp)
    w_okf = jnp.transpose(weight.reshape(Fout, Fin, K), (0, 2, 1))
    w_okf = jnp.pad(w_okf, ((0, 0), (0, 0), (0, Finp - Fin)))
    w2 = w_okf.reshape(Fout, KFp)

    flops = steps * (2 * (K - 1) * bt * Finp * Vp * Vp
                     + 2 * bt * Fout * KFp * Vp)
    bytes_accessed = 4 * (Bp * Finp * Vp + Vp * Vp + Fout * KFp + Bp * Fout * Vp)

    est_vmem = 4 * (2 * bt * Finp * Vp      # x blocks (double buffered)
                    + 2 * bt * Fout * Vp    # out blocks
                    + 2 * Vp * Vp           # resident L^T
                    + 2 * Fout * KFp        # resident weights
                    + bt * KFp * Vp         # Z scratch
                    + 3 * bt * Finp * Vp    # carried slabs / temporaries
                    + bt * Fout * KFp)      # broadcast weights
    vmem_limit = int(min(96 * 2 ** 20, max(32 * 2 ** 20, est_vmem * 3 // 2)))

    out = pl.pallas_call(
        _make_cheb_conv_kernel(K, Finp, bt, Fout, KFp),
        out_shape=jax.ShapeDtypeStruct((Bp, Fout, Vp), jnp.float32),
        grid_spec=pltpu.PrefetchScalarGridSpec(
            num_scalar_prefetch=0,
            grid=(steps,),
            in_specs=[
                pl.BlockSpec((bt, Finp, Vp), lambda i: (i, 0, 0)),   # x batch block
                pl.BlockSpec((Vp, Vp), lambda i: (0, 0)),            # L^T, resident
                pl.BlockSpec((Fout, KFp), lambda i: (0, 0)),         # W, resident
            ],
            out_specs=pl.BlockSpec((bt, Fout, Vp), lambda i: (i, 0, 0)),
            scratch_shapes=[pltpu.VMEM((bt, KFp, Vp), jnp.float32)],
        ),
        compiler_params=pltpu.CompilerParams(
            dimension_semantics=("parallel",),
            vmem_limit_bytes=vmem_limit),
        cost_estimate=pl.CostEstimate(
            flops=flops, transcendentals=0, bytes_accessed=bytes_accessed),
    )(x_p, lt_p, w2)

    return out[:B, :, :V]


# --------------------------- pure-JAX reference -------------------------------

def cheb_conv_reference(x, L_rescaled, weight, K):
    """Direct port of the PyTorch forward (dense L), f32-accurate matmuls."""
    B, Fin, V = x.shape
    Fout = weight.shape[0]
    hp = jax.lax.Precision.HIGHEST
    xt = jnp.transpose(x, (0, 2, 1))                          # (B, V, Fin)
    x0 = jnp.transpose(xt, (1, 2, 0)).reshape(V, Fin * B)
    terms = [x0]
    if K > 1:
        x1 = jnp.dot(L_rescaled, x0, precision=hp)
        terms.append(x1)
        for _ in range(2, K):
            x2 = 2.0 * jnp.dot(L_rescaled, x1, precision=hp) - x0
            terms.append(x2)
            x0, x1 = x1, x2
    xs = jnp.stack(terms, 0).reshape(K, V, Fin, B)
    xs = jnp.transpose(xs, (3, 1, 2, 0)).reshape(B * V, Fin * K)
    y = jnp.dot(xs, weight.T, precision=hp)
    return jnp.transpose(y.reshape(B, V, Fout), (0, 2, 1))


# ----------------------------------- main --------------------------------------

if __name__ == "__main__":
    B, Fin, V, Fout, K = 8, 4, 16, 8, 3

    # Deterministic graph Laplacian: ring graph on V vertices, L = D - A,
    # rescaled as in the module: L <- 2 L / lmax - I.
    A = np.zeros((V, V), np.float32)
    for i in range(V):
        A[i, (i + 1) % V] = 1.0
        A[(i + 1) % V, i] = 1.0
    Lap = np.diag(A.sum(1)) - A
    lmax = float(np.linalg.eigvalsh(Lap).max())
    L_rescaled = (2.0 * Lap / lmax - np.eye(V, dtype=np.float32)).astype(np.float32)

    # Deterministic init (module uses uniform(-scale, scale), bias=False).
    key = jax.random.PRNGKey(0)
    kx, kw = jax.random.split(key)
    scale = float(np.sqrt(2.0 / (Fin + Fout)))
    weight = jax.random.uniform(kw, (Fout, K * Fin), jnp.float32, -scale, scale)
    x = jax.random.normal(kx, (B, Fin, V), jnp.float32)

    out = jax.block_until_ready(
        cheb_conv_forward(x, jnp.asarray(L_rescaled), weight, K))

    ref = jax.block_until_ready(
        cheb_conv_reference(x, jnp.asarray(L_rescaled), weight, K))
    assert out.shape == (B, Fout, V), out.shape
    np.testing.assert_allclose(np.asarray(out), np.asarray(ref),
                               rtol=1e-5, atol=1e-5)

    print("KERNEL_OK")
</pallas_src>

<mosaic_0001>
module attributes {stable_mosaic.version = 11 : i64} {
  func.func @kernel(%arg0: i32, %arg1: memref<4x8x128xf32, #tpu.memory_space<vmem>>, %arg2: memref<128x128xf32, #tpu.memory_space<vmem>>, %arg3: memref<8x24xf32, #tpu.memory_space<vmem>>, %arg4: memref<4x8x128xf32, #tpu.memory_space<vmem>>, %arg5: memref<4x24x128xf32, #tpu.memory_space<vmem>>) attributes {dimension_semantics = [#tpu.dimension_semantics<parallel>], iteration_bounds = array<i64: 2>, scalar_prefetch = 0 : i64, scratch_operands = 1 : i64, tpu.core_type = #tpu.core_type<tc>, window_params = [{transform_indices = @transform_0, window_bounds = array<i64: 4, 8, 128>}, {pipeline_mode = #tpu.pipeline_mode<synchronous>, transform_indices = @transform_1, window_bounds = array<i64: 128, 128>}, {pipeline_mode = #tpu.pipeline_mode<synchronous>, transform_indices = @transform_2, window_bounds = array<i64: 8, 24>}, {transform_indices = @transform_3, window_bounds = array<i64: 4, 8, 128>}]} {
    %c0 = arith.constant 0 : index
    %c0_0 = arith.constant 0 : index
    %0 = vector.load %arg2[%c0, %c0_0] : memref<128x128xf32, #tpu.memory_space<vmem>>, vector<128x128xf32>
    %c0_1 = arith.constant 0 : index
    %c0_2 = arith.constant 0 : index
    %c0_3 = arith.constant 0 : index
    %1 = vector.load %arg1[%c0_1, %c0_2, %c0_3] : memref<4x8x128xf32, #tpu.memory_space<vmem>>, vector<4x8x128xf32>
    %2 = vector.shape_cast %1 : vector<4x8x128xf32> to vector<32x128xf32>
    %c0_4 = arith.constant 0 : index
    %c0_5 = arith.constant 0 : index
    %c0_6 = arith.constant 0 : index
    %3 = vector.load %arg1[%c0_4, %c0_5, %c0_6] : memref<4x8x128xf32, #tpu.memory_space<vmem>>, vector<4x8x128xf32>
    %c0_7 = arith.constant 0 : index
    %c0_8 = arith.constant 0 : index
    %c0_9 = arith.constant 0 : index
    %4 = vector.load %arg5[%c0_7, %c0_8, %c0_9] : memref<4x24x128xf32, #tpu.memory_space<vmem>>, vector<4x8x128xf32>
    tpu.vector_store %arg5[%c0_7, %c0_8, %c0_9], %3 {strides = array<i32>} : memref<4x24x128xf32, #tpu.memory_space<vmem>>, vector<4x8x128xf32>,
    %cst = arith.constant dense<0.000000e+00> : vector<32x128xf32>
    %5 = tpu.matmul %2, %0, %cst {dimension_numbers = #tpu.dot_dimension_numbers<[1], [0], [0], [1], [0, 0, 1, 1], [], []>} : vector<32x128xf32>, vector<128x128xf32>, vector<32x128xf32> -> vector<32x128xf32>
    %6 = vector.shape_cast %5 : vector<32x128xf32> to vector<4x8x128xf32>
    %c0_10 = arith.constant 0 : index
    %c8 = arith.constant 8 : index
    %c0_11 = arith.constant 0 : index
    %7 = vector.load %arg5[%c0_10, %c8, %c0_11] : memref<4x24x128xf32, #tpu.memory_space<vmem>>, vector<4x8x128xf32>
    tpu.vector_store %arg5[%c0_10, %c8, %c0_11], %6 {strides = array<i32>} : memref<4x24x128xf32, #tpu.memory_space<vmem>>, vector<4x8x128xf32>,
    %cst_12 = arith.constant dense<0.000000e+00> : vector<32x128xf32>
    %8 = tpu.matmul %5, %0, %cst_12 {dimension_numbers = #tpu.dot_dimension_numbers<[1], [0], [0], [1], [0, 0, 1, 1], [], []>} : vector<32x128xf32>, vector<128x128xf32>, vector<32x128xf32> -> vector<32x128xf32>
    %cst_13 = arith.constant 2.000000e+00 : f32
    %9 = vector.broadcast %cst_13 : f32 to vector<32x128xf32>
    %10 = arith.mulf %9, %8 : vector<32x128xf32>
    %11 = arith.subf %10, %2 : vector<32x128xf32>
    %12 = vector.shape_cast %11 : vector<32x128xf32> to vector<4x8x128xf32>
    %c0_14 = arith.constant 0 : index
    %c16 = arith.constant 16 : index
    %c0_15 = arith.constant 0 : index
    %13 = vector.load %arg5[%c0_14, %c16, %c0_15] : memref<4x24x128xf32, #tpu.memory_space<vmem>>, vector<4x8x128xf32>
    tpu.vector_store %arg5[%c0_14, %c16, %c0_15], %12 {strides = array<i32>} : memref<4x24x128xf32, #tpu.memory_space<vmem>>, vector<4x8x128xf32>,
    %c0_16 = arith.constant 0 : index
    %c0_17 = arith.constant 0 : index
    %14 = vector.load %arg3[%c0_16, %c0_17] : memref<8x24xf32, #tpu.memory_space<vmem>>, vector<8x24xf32>
    %15 = vector.shape_cast %14 : vector<8x24xf32> to vector<1x8x24xf32>
    %16 = vector.shape_cast %15 : vector<1x8x24xf32> to vector<1x8x24xf32>
    %17 = vector.broadcast %16 : vector<1x8x24xf32> to vector<4x8x24xf32>
    %c0_18 = arith.constant 0 : index
    %c0_19 = arith.constant 0 : index
    %c0_20 = arith.constant 0 : index
    %18 = vector.load %arg5[%c0_18, %c0_19, %c0_20] : memref<4x24x128xf32, #tpu.memory_space<vmem>>, vector<4x24x128xf32>
    "tpu.trace_start"() <{level = 10 : i32, message = "bof,bfv->bov"}> : () -> ()
    %cst_21 = arith.constant dense<0.000000e+00> : vector<4x8x128xf32>
    %19 = tpu.matmul %17, %18, %cst_21 {dimension_numbers = #tpu.dot_dimension_numbers<[2], [1], [1], [2], [0, 0, 0, 1, 1, 2], [0], [0]>} : vector<4x8x24xf32>, vector<4x24x128xf32>, vector<4x8x128xf32> -> vector<4x8x128xf32>
    "tpu.trace_stop"() : () -> ()
    %c0_22 = arith.constant 0 : index
    %c0_23 = arith.constant 0 : index
    %c0_24 = arith.constant 0 : index
    %20 = vector.load %arg4[%c0_22, %c0_23, %c0_24] : memref<4x8x128xf32, #tpu.memory_space<vmem>>, vector<4x8x128xf32>
    tpu.vector_store %arg4[%c0_22, %c0_23, %c0_24], %19 {strides = array<i32>} : memref<4x8x128xf32, #tpu.memory_space<vmem>>, vector<4x8x128xf32>,
    return
  }
  func.func @transform_0(%arg0: i32) -> (i32, i32, i32) {
    %c0_i32 = arith.constant 0 : i32
    %c0_i32_0 = arith.constant 0 : i32
    %c0_i32_1 = arith.constant 0 : i32
    return %arg0, %c0_i32, %c0_i32_0 : i32, i32, i32
  }
  func.func @transform_1(%arg0: i32) -> (i32, i32) {
    %c0_i32 = arith.constant 0 : i32
    %c0_i32_0 = arith.constant 0 : i32
    %c0_i32_1 = arith.constant 0 : i32
    return %c0_i32, %c0_i32_0 : i32, i32
  }
  func.func @transform_2(%arg0: i32) -> (i32, i32) {
    %c0_i32 = arith.constant 0 : i32
    %c0_i32_0 = arith.constant 0 : i32
    %c0_i32_1 = arith.constant 0 : i32
    return %c0_i32, %c0_i32_0 : i32, i32
  }
  func.func @transform_3(%arg0: i32) -> (i32, i32, i32) {
    %c0_i32 = arith.constant 0 : i32
    %c0_i32_0 = arith.constant 0 : i32
    %c0_i32_1 = arith.constant 0 : i32
    return %arg0, %c0_i32, %c0_i32_0 : i32, i32, i32
  }
}

</mosaic_0001>

<llo_original>
// kernel: tpu_custom_call.1
$region0: #{tpu_custom_call.1}
  #allocation0 [shape = 'u32[]', space=smem, size = 0x4, offset = 0x4, fixed_abs, tag = 'smem constant byte address 0x4 - core index']
  #allocation1 [shape = 'u32[144,128]{1,0:T(1,128)}', space=vmem, size = 0x12000, scoped, tag = 'internal scratch']
  #allocation2 [shape = 'f32[4,24,128]{2,1,0:T(8,128)}', space=vmem, size = 0xc000, scoped, tag = 'scratch operand']
  %s0 = inlined_call_operand.hbm [shape: f32[8,8,128], index: 0, kind: input, shape index: {}]
  %s1 = inlined_call_operand.hbm [shape: f32[128,128], index: 1, kind: input, shape index: {}]
  %s2 = inlined_call_operand.hbm [shape: f32[8,24], index: 2, kind: input, shape index: {}]
  %s3 = inlined_call_operand.hbm [shape: f32[8,8,128], index: 3, kind: output, shape index: {}]
  %s4 = sld [smem:[#allocation0]]
  $region57: #{tpu_custom_call.1} parent=0
    _
  %s6 = ssub.s32 1, %s4
  %s7 = scalar_select 0, %s6, %s4
  $region1: #{tpu_custom_call.1} parent=0
    #allocation3 [shape = 'u8[32768]{0}', space=vmem, size = 0x8000, scoped, tag = 'input window, operand 0']
    #allocation4 [shape = 's32[2]{0}', space=sflag, size = 0x8, scoped, tag = 'scoped memory for tpu_custom_call.1']
    #allocation5 [shape = 's32[2]{0}', space=sflag, size = 0x8, scoped, tag = 'scoped memory for tpu_custom_call.1']
    #allocation6 [shape = 'u8[65536]{0}', space=vmem, size = 0x10000, scoped, tag = 'input window, operand 1, single buffered']
    #allocation7 [shape = 's32[1]{0}', space=sflag, size = 0x4, scoped, tag = 'scoped memory for tpu_custom_call.1']
    #allocation8 [shape = 'u8[4096]{0}', space=vmem, size = 0x1000, scoped, tag = 'input window, operand 2, single buffered']
    #allocation9 [shape = 'u8[32768]{0}', space=vmem, size = 0x8000, scoped, tag = 'output window, operand 0']
    %8 = vsyncpa [#allocation4], 0
    %s9 = scalar_lea.sflag [#allocation4], 1
    %10 = vsyncpa %s9, 0
    %11 = vsyncpa [#allocation7], 0
    %12 = vsyncpa [#allocation5], 0
    %s13 = scalar_lea.sflag [#allocation5], 1
    %14 = vsyncpa %s13, 0
    loop: start=0, step=1, limit=4
    $region2: #{tpu_custom_call.1} parent=1 // loop_pre_header
      _
    $region3: #{tpu_custom_call.1} parent=1 // loop_header
      %s16 = sphi 0, %s20
      %p17 = scmp.ge.s32.totalorder %s16, 4
      %s26 = sphi 0, %s28
      %s29 = sphi 0, %s26
      %s30 = sphi 0, %s29
      %s46 = sphi 0, %s30
      %s50 = sphi 0, %s50
      %s52 = sphi 0, %s50
      %s53 = sphi 0, %s52
      %s67 = sphi 0, %s53
      %s71 = sphi 0, %s71
      %s73 = sphi 0, %s71
      %s74 = sphi 0, %s73
      %s88 = sphi 0, %s74
      %s94 = sphi 0, %s96
      %s97 = sphi 0, %s94
      %s98 = sphi 0, %s97
      %s114 = sphi 0, %s98
    $region4: #{tpu_custom_call.1} parent=1 // loop_header_branch
      %19 = sbr.rel (%p17) target = $region8
    $region5: #{tpu_custom_call.1} parent=1 // loop_body
      %s21 = ssub.s32 %s16, 1
      %s22 = ssub.s32 %s16, 2
      %s23 = sadd.s32 %s16, 1
      %s24 = ssub.s32 %s16, %s23
      %p25 = scmp.eq.s32.totalorder %s24, 0
      %s27 = sadd.s32 %s26, 1
      %s28 = scalar_select %p25, %s26, %s27
      %p31 = pneg %p25
      %p32 = scmp.eq.s32.totalorder %s16, 1
      %p33 = por %p31, %p32
      %p34 = scmp.ne.s32.totalorder %s26, %s29
      %p35 = scmp.eq.s32.totalorder %s16, 0
      %p36 = por %p34, %p35
      %p37 = scmp.ne.s32.totalorder %s26, %s29
      %p38 = scmp.eq.s32.totalorder %s21, 1
      %p39 = por %p37, %p38
      %p40 = scmp.ne.s32.totalorder %s29, %s30
      %p41 = scmp.eq.s32.totalorder %s21, 0
      %p42 = por %p40, %p41
      %p43 = scmp.ne.s32.totalorder %s29, %s30
      %p44 = scmp.eq.s32.totalorder %s22, 1
      %p45 = por %p43, %p44
      %p47 = scmp.ne.s32.totalorder %s30, %s46
      %p48 = scmp.eq.s32.totalorder %s22, 0
      %p49 = por %p47, %p48
      %s51 = sadd.s32 %s50, 1
      %p54 = scmp.eq.s32.totalorder %s16, 1
      %p55 = scmp.ne.s32.totalorder %s50, %s52
      %p56 = scmp.eq.s32.totalorder %s16, 0
      %p57 = por %p55, %p56
      %p58 = scmp.ne.s32.totalorder %s50, %s52
      %p59 = scmp.eq.s32.totalorder %s21, 1
      %p60 = por %p58, %p59
      %p61 = scmp.ne.s32.totalorder %s52, %s53
      %p62 = scmp.eq.s32.totalorder %s21, 0
      %p63 = por %p61, %p62
      %p64 = scmp.ne.s32.totalorder %s52, %s53
      %p65 = scmp.eq.s32.totalorder %s22, 1
      %p66 = por %p64, %p65
      %p68 = scmp.ne.s32.totalorder %s53, %s67
      %p69 = scmp.eq.s32.totalorder %s22, 0
      %p70 = por %p68, %p69
      %s72 = sadd.s32 %s71, 1
      %p75 = scmp.eq.s32.totalorder %s16, 1
      %p76 = scmp.ne.s32.totalorder %s71, %s73
      %p77 = scmp.eq.s32.totalorder %s16, 0
      %p78 = por %p76, %p77
      %p79 = scmp.ne.s32.totalorder %s71, %s73
      %p80 = scmp.eq.s32.totalorder %s21, 1
      %p81 = por %p79, %p80
      %p82 = scmp.ne.s32.totalorder %s73, %s74
      %p83 = scmp.eq.s32.totalorder %s21, 0
      %p84 = por %p82, %p83
      %p85 = scmp.ne.s32.totalorder %s73, %s74
      %p86 = scmp.eq.s32.totalorder %s22, 1
      %p87 = por %p85, %p86
      %p89 = scmp.ne.s32.totalorder %s74, %s88
      %p90 = scmp.eq.s32.totalorder %s22, 0
      %p91 = por %p89, %p90
      %s92 = ssub.s32 %s16, %s23
      %p93 = scmp.eq.s32.totalorder %s92, 0
      %s95 = sadd.s32 %s94, 1
      %s96 = scalar_select %p93, %s94, %s95
      %p99 = pneg %p93
      %p100 = scmp.eq.s32.totalorder %s16, 1
      %p101 = por %p99, %p100
      %p102 = scmp.ne.s32.totalorder %s94, %s97
      %p103 = scmp.eq.s32.totalorder %s16, 0
      %p104 = por %p102, %p103
      %p105 = scmp.ne.s32.totalorder %s94, %s97
      %p106 = scmp.eq.s32.totalorder %s21, 1
      %p107 = por %p105, %p106
      %p108 = scmp.ne.s32.totalorder %s97, %s98
      %p109 = scmp.eq.s32.totalorder %s21, 0
      %p110 = por %p108, %p109
      %p111 = scmp.ne.s32.totalorder %s97, %s98
      %p112 = scmp.eq.s32.totalorder %s22, 1
      %p113 = por %p111, %p112
      %p115 = scmp.ne.s32.totalorder %s98, %s114
      %p116 = scmp.eq.s32.totalorder %s22, 0
      %p117 = por %p115, %p116
      %p118 = scmp.le.s32.totalorder 1, %s16
      %p119 = scmp.lt.s32.totalorder %s16, 3
      %p120 = pnand %p118, %p119
      %p121 = pneg %p120
      // Predicated region
      $region9: #{tpu_custom_call.1} parent=5 // pred_check
        _
      $region10: #{tpu_custom_call.1} parent=5 // pred_check_branch
        %123 = sbr.rel (%p120) target = $region12
      $region11: #{tpu_custom_call.1} parent=5 // pred_region
        %s124 = ssub.s32 %s16, 1
        // Predicated region
        $region13: #{tpu_custom_call.1} parent=11 // pred_check
          %p125 = pneg %p63
        $region14: #{tpu_custom_call.1} parent=11 // pred_check_branch
          %127 = sbr.rel (%p125) target = $region16
        $region15: #{tpu_custom_call.1} parent=11 // pred_region
          %s129 = ssub.s32 2048, 2048
          %130 = vsyncadd [#allocation7], %s129
          %s131 = sshll.u32 [#allocation6], 4
          %s132 = int_to_ptr.vmem [resolvable:$true] %s131
          %137 = dma.hbm_to_vmem [thread:$0]  %s1, 2048, %s132, [#allocation7], 128, 128, 8
        $region16: #{tpu_custom_call.1} parent=11 // pred_fallthru
          _
        // Predicated region
        $region17: #{tpu_custom_call.1} parent=11 // pred_check
          %p138 = pneg %p84
        $region18: #{tpu_custom_call.1} parent=11 // pred_check_branch
          %140 = sbr.rel (%p138) target = $region20
        $region19: #{tpu_custom_call.1} parent=11 // pred_region
          %s142 = ssub.s32 128, 128
          %143 = vsyncadd [#allocation7], %s142
          %s145 = sshll.u32 [#allocation8], 4
          %s146 = int_to_ptr.vmem [resolvable:$true] %s145
          %148 = dma.hbm_to_vmem [thread:$0]  %s2, 128, %s146, [#allocation7]
        $region20: #{tpu_custom_call.1} parent=11 // pred_fallthru
          _
      $region12: #{tpu_custom_call.1} parent=5 // pred_fallthru
        _
      %p149 = scmp.lt.s32.totalorder %s16, 2
      // Predicated region
      $region21: #{tpu_custom_call.1} parent=5 // pred_check
        %p150 = pneg %p149
      $region22: #{tpu_custom_call.1} parent=5 // pred_check_branch
        %152 = sbr.rel (%p150) target = $region24
      $region23: #{tpu_custom_call.1} parent=5 // pred_region
        // Predicated region
        $region25: #{tpu_custom_call.1} parent=23 // pred_check
          %p153 = pneg %p36
        $region26: #{tpu_custom_call.1} parent=23 // pred_check_branch
          %155 = sbr.rel (%p153) target = $region28
        $region27: #{tpu_custom_call.1} parent=23 // pred_region
          %s156 = sand.u32 %s26, 1
          %s157 = scalar_lea.sflag [#allocation4], %s156
          %s158 = sand.u32 %s26, 1
          %s159 = smul.addr %s158, 32
          %s160 = scalar_lea.vmem [#allocation3], %s159
          %s161 = smul.u32 4, %s16
          %s163 = ssub.s32 512, 512
          %164 = vsyncadd %s157, %s163
          %s165 = smul.addr %s161, 128
          %s166 = scalar_lea.hbm %s0, %s165
          %s167 = sshll.u32 %s160, 4
          %s168 = int_to_ptr.vmem [resolvable:$true] %s167
          %173 = dma.hbm_to_vmem [thread:$0]  %s166, 512, %s168, %s157, 128, 128, 8
        $region28: #{tpu_custom_call.1} parent=23 // pred_fallthru
          _
      $region24: #{tpu_custom_call.1} parent=5 // pred_fallthru
        _
      %p174 = scmp.le.s32.totalorder 1, %s16
      %p175 = scmp.lt.s32.totalorder %s16, 3
      %p176 = pnand %p174, %p175
      %p177 = pneg %p176
      // Predicated region
      $region29: #{tpu_custom_call.1} parent=5 // pred_check
        _
      $region30: #{tpu_custom_call.1} parent=5 // pred_check_branch
        %179 = sbr.rel (%p176) target = $region32
      $region31: #{tpu_custom_call.1} parent=5 // pred_region
        %s180 = ssub.s32 %s16, 1
        %s181 = sand.u32 %s29, 1
        %s182 = scalar_lea.sflag [#allocation4], %s181
        %s183 = sand.u32 %s29, 1
        %s184 = smul.addr %s183, 32
        %s185 = scalar_lea.vmem [#allocation3], %s184
        // Predicated region
        $region33: #{tpu_custom_call.1} parent=31 // pred_check
          %p186 = pneg %p42
        $region34: #{tpu_custom_call.1} parent=31 // pred_check_branch
          %188 = sbr.rel (%p186) target = $region36
        $region35: #{tpu_custom_call.1} parent=31 // pred_region
          %189 = dma.done %s182, 512
        $region36: #{tpu_custom_call.1} parent=31 // pred_fallthru
          _
        // Predicated region
        $region37: #{tpu_custom_call.1} parent=31 // pred_check
          %p190 = pneg %p63
        $region38: #{tpu_custom_call.1} parent=31 // pred_check_branch
          %192 = sbr.rel (%p190) target = $region40
        $region39: #{tpu_custom_call.1} parent=31 // pred_region
          %193 = dma.done [#allocation7], 2048
        $region40: #{tpu_custom_call.1} parent=31 // pred_fallthru
          _
        // Predicated region
        $region41: #{tpu_custom_call.1} parent=31 // pred_check
          %p194 = pneg %p84
        $region42: #{tpu_custom_call.1} parent=31 // pred_check_branch
          %196 = sbr.rel (%p194) target = $region44
        $region43: #{tpu_custom_call.1} parent=31 // pred_region
          %197 = dma.done [#allocation7], 128
        $region44: #{tpu_custom_call.1} parent=31 // pred_fallthru
          _
        %s198 = sand.u32 %s29, 1
        %s199 = scalar_lea.sflag [#allocation4], %s198
        %s200 = sand.u32 %s29, 1
        %s201 = smul.addr %s200, 32
        %s202 = scalar_lea.vmem [#allocation3], %s201
        %p203 = pneg %p42
        %p204 = pneg %p39
        %p205 = pneg %p63
        %p206 = pneg %p60
        %p207 = pneg %p84
        %p208 = pneg %p81
        %p209 = pneg %p110
        %p210 = pneg %p107
        %s211 = sand.u32 %s97, 1
        %s212 = scalar_lea.sflag [#allocation5], %s211
        %s213 = sand.u32 %s97, 1
        %s214 = smul.addr %s213, 32
        %s215 = scalar_lea.vmem [#allocation9], %s214
        %s216 = smul.u32 4, %s21
        %s217 = smul.u32 4, %s21
        %v218 = vld [vmem:[#allocation6] sm:$0xff]
        %v219 = vld [vmem:[#allocation6 + $0x8] sm:$0xff]
        %v220 = vld [vmem:[#allocation6 + $0x10] sm:$0xff]
        %v221 = vld [vmem:[#allocation6 + $0x18] sm:$0xff]
        %v222 = vld [vmem:[#allocation6 + $0x20] sm:$0xff]
        %v223 = vld [vmem:[#allocation6 + $0x28] sm:$0xff]
        %v224 = vld [vmem:[#allocation6 + $0x30] sm:$0xff]
        %v225 = vld [vmem:[#allocation6 + $0x38] sm:$0xff]
        %v226 = vld [vmem:[#allocation6 + $0x40] sm:$0xff]
        %v227 = vld [vmem:[#allocation6 + $0x48] sm:$0xff]
        %v228 = vld [vmem:[#allocation6 + $0x50] sm:$0xff]
        %v229 = vld [vmem:[#allocation6 + $0x58] sm:$0xff]
        %v230 = vld [vmem:[#allocation6 + $0x60] sm:$0xff]
        %v231 = vld [vmem:[#allocation6 + $0x68] sm:$0xff]
        %v232 = vld [vmem:[#allocation6 + $0x70] sm:$0xff]
        %v233 = vld [vmem:[#allocation6 + $0x78] sm:$0xff]
        %v234 = vld [vmem:[%s185] sm:$0xff]
        %v235 = vld [vmem:[%s185 + $0x8] sm:$0xff]
        %v236 = vld [vmem:[%s185 + $0x10] sm:$0xff]
        %v237 = vld [vmem:[%s185 + $0x18] sm:$0xff]
        %238 = vst [vmem:[#allocation2] sm:$0xff] %v234
        %239 = vst [vmem:[#allocation2 + $0x18] sm:$0xff] %v235
        %240 = vst [vmem:[#allocation2 + $0x30] sm:$0xff] %v236
        %241 = vst [vmem:[#allocation2 + $0x48] sm:$0xff] %v237
        %242 = vmatprep.subr.mxu0 0.0
        %243 = vmatpush1.msra.mxu0 %v233
        %244 = vmatprep.subr.mxu0 0.0
        %245 = vmatpush1.msra.mxu0 %v232
        %246 = vmatprep.subr.mxu0 0.0
        %247 = vmatpush1.msra.mxu0 %v231
        %248 = vmatprep.subr.mxu0 0.0
        %249 = vmatpush1.msra.mxu0 %v230
        %250 = vmatprep.subr.mxu0 0.0
        %251 = vmatpush1.msra.mxu0 %v229
        %252 = vmatprep.subr.mxu0 0.0
        %253 = vmatpush1.msra.mxu0 %v228
        %254 = vmatprep.subr.mxu0 0.0
        %255 = vmatpush1.msra.mxu0 %v227
        %256 = vmatprep.subr.mxu0 0.0
        %257 = vmatpush1.msra.mxu0 %v226
        %258 = vmatprep.subr.mxu0 0.0
        %259 = vmatpush1.msra.mxu0 %v225
        %260 = vmatprep.subr.mxu0 0.0
        %261 = vmatpush1.msra.mxu0 %v224
        %262 = vmatprep.subr.mxu0 0.0
        %263 = vmatpush1.msra.mxu0 %v223
        %264 = vmatprep.subr.mxu0 0.0
        %265 = vmatpush1.msra.mxu0 %v222
        %266 = vmatprep.subr.mxu0 0.0
        %267 = vmatpush1.msra.mxu0 %v221
        %268 = vmatprep.subr.mxu0 0.0
        %269 = vmatpush1.msra.mxu0 %v220
        %270 = vmatprep.subr.mxu0 0.0
        %271 = vmatpush1.msra.mxu0 %v219
        %272 = vmatprep.subr.mxu0 0.0
        %273 = vmatpush1.msra.mxu0 %v218
        %274 = vmatprep.subr.mxu0 0.0
        %275 = vmatpush2.msra.mxu0 0.0
        %276 = vmatprep.subr.mxu0 0.0
        %277 = vmatpush2.msra.mxu0 0.0
        %278 = vmatprep.subr.mxu0 0.0
        %279 = vmatpush2.msra.mxu0 0.0
        %280 = vmatprep.subr.mxu0 0.0
        %281 = vmatpush2.msra.mxu0 0.0
        %282 = vmatprep.subr.mxu0 0.0
        %283 = vmatpush2.msra.mxu0 0.0
        %284 = vmatprep.subr.mxu0 0.0
        %285 = vmatpush2.msra.mxu0 0.0
        %286 = vmatprep.subr.mxu0 0.0
        %287 = vmatpush2.msra.mxu0 0.0
        %288 = vmatprep.subr.mxu0 0.0
        %289 = vmatpush2.msra.mxu0 0.0
        %290 = vmatprep.subr.mxu0 0.0
        %291 = vmatpush2.msra.mxu0 0.0
        %292 = vmatprep.subr.mxu0 0.0
        %293 = vmatpush2.msra.mxu0 0.0
        %294 = vmatprep.subr.mxu0 0.0
        %295 = vmatpush2.msra.mxu0 0.0
        %296 = vmatprep.subr.mxu0 0.0
        %297 = vmatpush2.msra.mxu0 0.0
        %298 = vmatprep.subr.mxu0 0.0
        %299 = vmatpush2.msra.mxu0 0.0
        %300 = vmatprep.subr.mxu0 0.0
        %301 = vmatpush2.msra.mxu0 0.0
        %302 = vmatprep.subr.mxu0 0.0
        %303 = vmatpush2.msra.mxu0 0.0
        %304 = vmatprep.subr.mxu0 0.0
        %305 = vmatpush2.msra.mxu0 0.0
        %306 = vmatprep.mubr.f32.mxu0 0.0
        %307 = vmatmul.mubr.f32.gmra.mxu0 %v234
        %v308 = vpop.f32.mrf.mxu0
        %v309 = vadd.f32 0.0, %v308
        %v310 = vpop.f32.mrf.mxu0
        %311 = vmatprep.mubr.f32.mxu0 0.0
        %312 = vmatmul.mubr.f32.gmra.mxu0 %v235
        %v313 = vpop.f32.mrf.mxu0
        %v314 = vadd.f32 0.0, %v313
        %v315 = vpop.f32.mrf.mxu0
        %316 = vmatprep.mubr.f32.mxu0 0.0
        %317 = vmatmul.mubr.f32.gmra.mxu0 %v236
        %v318 = vpop.f32.mrf.mxu0
        %v319 = vadd.f32 0.0, %v318
        %v320 = vpop.f32.mrf.mxu0
        %321 = vmatprep.mubr.f32.mxu0 0.0
        %322 = vmatmul.mubr.f32.gmra.mxu0 %v237
        %v323 = vpop.f32.mrf.mxu0
        %v324 = vadd.f32 0.0, %v323
        %v325 = vpop.f32.mrf.mxu0
        %326 = vdwg.mxu0
        %327 = vst [vmem:[#allocation2 + $0x8] sm:$0xff] %v309
        %328 = vst [vmem:[#allocation2 + $0x20] sm:$0xff] %v314
        %329 = vst [vmem:[#allocation2 + $0x38] sm:$0xff] %v319
        %330 = vst [vmem:[#allocation2 + $0x50] sm:$0xff] %v324
        %331 = vmatprep.subr.mxu0 0.0
        %332 = vmatpush1.msra.mxu0 %v233
        %333 = vmatprep.subr.mxu0 0.0
        %334 = vmatpush1.msra.mxu0 %v232
        %335 = vmatprep.subr.mxu0 0.0
        %336 = vmatpush1.msra.mxu0 %v231
        %337 = vmatprep.subr.mxu0 0.0
        %338 = vmatpush1.msra.mxu0 %v230
        %339 = vmatprep.subr.mxu0 0.0
        %340 = vmatpush1.msra.mxu0 %v229
        %341 = vmatprep.subr.mxu0 0.0
        %342 = vmatpush1.msra.mxu0 %v228
        %343 = vmatprep.subr.mxu0 0.0
        %344 = vmatpush1.msra.mxu0 %v227
        %345 = vmatprep.subr.mxu0 0.0
        %346 = vmatpush1.msra.mxu0 %v226
        %347 = vmatprep.subr.mxu0 0.0
        %348 = vmatpush1.msra.mxu0 %v225
        %349 = vmatprep.subr.mxu0 0.0
        %350 = vmatpush1.msra.mxu0 %v224
        %351 = vmatprep.subr.mxu0 0.0
        %352 = vmatpush1.msra.mxu0 %v223
        %353 = vmatprep.subr.mxu0 0.0
        %354 = vmatpush1.msra.mxu0 %v222
        %355 = vmatprep.subr.mxu0 0.0
        %356 = vmatpush1.msra.mxu0 %v221
        %357 = vmatprep.subr.mxu0 0.0
        %358 = vmatpush1.msra.mxu0 %v220
        %359 = vmatprep.subr.mxu0 0.0
        %360 = vmatpush1.msra.mxu0 %v219
        %361 = vmatprep.subr.mxu0 0.0
        %362 = vmatpush1.msra.mxu0 %v218
        %363 = vmatprep.subr.mxu0 0.0
        %364 = vmatpush2.msra.mxu0 0.0
        %365 = vmatprep.subr.mxu0 0.0
        %366 = vmatpush2.msra.mxu0 0.0
        %367 = vmatprep.subr.mxu0 0.0
        %368 = vmatpush2.msra.mxu0 0.0
        %369 = vmatprep.subr.mxu0 0.0
        %370 = vmatpush2.msra.mxu0 0.0
        %371 = vmatprep.subr.mxu0 0.0
        %372 = vmatpush2.msra.mxu0 0.0
        %373 = vmatprep.subr.mxu0 0.0
        %374 = vmatpush2.msra.mxu0 0.0
        %375 = vmatprep.subr.mxu0 0.0
        %376 = vmatpush2.msra.mxu0 0.0
        %377 = vmatprep.subr.mxu0 0.0
        %378 = vmatpush2.msra.mxu0 0.0
        %379 = vmatprep.subr.mxu0 0.0
        %380 = vmatpush2.msra.mxu0 0.0
        %381 = vmatprep.subr.mxu0 0.0
        %382 = vmatpush2.msra.mxu0 0.0
        %383 = vmatprep.subr.mxu0 0.0
        %384 = vmatpush2.msra.mxu0 0.0
        %385 = vmatprep.subr.mxu0 0.0
        %386 = vmatpush2.msra.mxu0 0.0
        %387 = vmatprep.subr.mxu0 0.0
        %388 = vmatpush2.msra.mxu0 0.0
        %389 = vmatprep.subr.mxu0 0.0
        %390 = vmatpush2.msra.mxu0 0.0
        %391 = vmatprep.subr.mxu0 0.0
        %392 = vmatpush2.msra.mxu0 0.0
        %393 = vmatprep.subr.mxu0 0.0
        %394 = vmatpush2.msra.mxu0 0.0
        %395 = vmatprep.mubr.f32.mxu0 0.0
        %396 = vmatmul.mubr.f32.gmra.mxu0 %v309
        %v397 = vpop.f32.mrf.mxu0
        %v398 = vadd.f32 0.0, %v397
        %v399 = vpop.f32.mrf.mxu0
        %400 = vmatprep.mubr.f32.mxu0 0.0
        %401 = vmatmul.mubr.f32.gmra.mxu0 %v314
        %v402 = vpop.f32.mrf.mxu0
        %v403 = vadd.f32 0.0, %v402
        %v404 = vpop.f32.mrf.mxu0
        %405 = vmatprep.mubr.f32.mxu0 0.0
        %406 = vmatmul.mubr.f32.gmra.mxu0 %v319
        %v407 = vpop.f32.mrf.mxu0
        %v408 = vadd.f32 0.0, %v407
        %v409 = vpop.f32.mrf.mxu0
        %410 = vmatprep.mubr.f32.mxu0 0.0
        %411 = vmatmul.mubr.f32.gmra.mxu0 %v324
        %v412 = vpop.f32.mrf.mxu0
        %v413 = vadd.f32 0.0, %v412
        %v414 = vpop.f32.mrf.mxu0
        %415 = vdwg.mxu0
        %v416 = vmul.f32 %v398, 2.0
        %v417 = vmul.f32 %v403, 2.0
        %v418 = vmul.f32 %v408, 2.0
        %v419 = vmul.f32 %v413, 2.0
        %v420 = vsub.f32 %v416, %v234
        %v421 = vsub.f32 %v417, %v235
        %v422 = vsub.f32 %v418, %v236
        %v423 = vsub.f32 %v419, %v237
        %424 = vst [vmem:[#allocation2 + $0x10] sm:$0xff] %v420
        %425 = vst [vmem:[#allocation2 + $0x28] sm:$0xff] %v421
        %426 = vst [vmem:[#allocation2 + $0x40] sm:$0xff] %v422
        %427 = vst [vmem:[#allocation2 + $0x58] sm:$0xff] %v423
        %v428 = vld [vmem:[#allocation8] sm:$0xff]
        %v429 = vld [vmem:[#allocation2] sm:$0xff]
        %v430 = vld [vmem:[#allocation2 + $0x8] sm:$0xff]
        %v431 = vld [vmem:[#allocation2 + $0x10] sm:$0xff]
        %v432 = vld [vmem:[#allocation2 + $0x18] sm:$0xff]
        %v433 = vld [vmem:[#allocation2 + $0x20] sm:$0xff]
        %v434 = vld [vmem:[#allocation2 + $0x28] sm:$0xff]
        %v435 = vld [vmem:[#allocation2 + $0x30] sm:$0xff]
        %v436 = vld [vmem:[#allocation2 + $0x38] sm:$0xff]
        %v437 = vld [vmem:[#allocation2 + $0x40] sm:$0xff]
        %v438 = vld [vmem:[#allocation2 + $0x48] sm:$0xff]
        %v439 = vld [vmem:[#allocation2 + $0x50] sm:$0xff]
        %v440 = vld [vmem:[#allocation2 + $0x58] sm:$0xff]
        %vm441 = vcmask 195584
        %v443 = vsel %vm441, %v428, 0
        %445 = vmatprep.subr.mxu0 0.0
        %446 = vmatpush1.msra.mxu0 0.0
        %447 = vmatprep.subr.mxu0 0.0
        %448 = vmatpush1.msra.mxu0 0.0
        %449 = vmatprep.subr.mxu0 0.0
        %450 = vmatpush1.msra.mxu0 0.0
        %451 = vmatprep.subr.mxu0 0.0
        %452 = vmatpush1.msra.mxu0 0.0
        %453 = vmatprep.subr.mxu0 0.0
        %454 = vmatpush1.msra.mxu0 0.0
        %455 = vmatprep.subr.mxu0 0.0
        %456 = vmatpush1.msra.mxu0 0.0
        %457 = vmatprep.subr.mxu0 0.0
        %458 = vmatpush1.msra.mxu0 0.0
        %459 = vmatprep.subr.mxu0 0.0
        %460 = vmatpush1.msra.mxu0 0.0
        %461 = vmatprep.subr.mxu0 0.0
        %462 = vmatpush1.msra.mxu0 0.0
        %463 = vmatprep.subr.mxu0 0.0
        %464 = vmatpush1.msra.mxu0 0.0
        %465 = vmatprep.subr.mxu0 0.0
        %466 = vmatpush1.msra.mxu0 0.0
        %467 = vmatprep.subr.mxu0 0.0
        %468 = vmatpush1.msra.mxu0 0.0
        %469 = vmatprep.subr.mxu0 0.0
        %470 = vmatpush1.msra.mxu0 0.0
        %471 = vmatprep.subr.mxu0 0.0
        %472 = vmatpush1.msra.mxu0 %v431
        %473 = vmatprep.subr.mxu0 0.0
        %474 = vmatpush1.msra.mxu0 %v430
        %475 = vmatprep.subr.mxu0 0.0
        %476 = vmatpush1.msra.mxu0 %v429
        %477 = vmatprep.subr.mxu0 0.0
        %478 = vmatpush2.msra.mxu0 0.0
        %479 = vmatprep.subr.mxu0 0.0
        %480 = vmatpush2.msra.mxu0 0.0
        %481 = vmatprep.subr.mxu0 0.0
        %482 = vmatpush2.msra.mxu0 0.0
        %483 = vmatprep.subr.mxu0 0.0
        %484 = vmatpush2.msra.mxu0 0.0
        %485 = vmatprep.subr.mxu0 0.0
        %486 = vmatpush2.msra.mxu0 0.0
        %487 = vmatprep.subr.mxu0 0.0
        %488 = vmatpush2.msra.mxu0 0.0
        %489 = vmatprep.subr.mxu0 0.0
        %490 = vmatpush2.msra.mxu0 0.0
        %491 = vmatprep.subr.mxu0 0.0
        %492 = vmatpush2.msra.mxu0 0.0
        %493 = vmatprep.subr.mxu0 0.0
        %494 = vmatpush2.msra.mxu0 0.0
        %495 = vmatprep.subr.mxu0 0.0
        %496 = vmatpush2.msra.mxu0 0.0
        %497 = vmatprep.subr.mxu0 0.0
        %498 = vmatpush2.msra.mxu0 0.0
        %499 = vmatprep.subr.mxu0 0.0
        %500 = vmatpush2.msra.mxu0 0.0
        %501 = vmatprep.subr.mxu0 0.0
        %502 = vmatpush2.msra.mxu0 0.0
        %503 = vmatprep.subr.mxu0 0.0
        %504 = vmatpush2.msra.mxu0 0.0
        %505 = vmatprep.subr.mxu0 0.0
        %506 = vmatpush2.msra.mxu0 0.0
        %507 = vmatprep.subr.mxu0 0.0
        %508 = vmatpush2.msra.mxu0 0.0
        %509 = vmatprep.mubr.f32.mxu0 0.0
        %510 = vmatmul.mubr.f32.gmra.mxu0 %v443
        %v511 = vpop.f32.mrf.mxu0
        %v512 = vadd.f32 0.0, %v511
        %v513 = vpop.f32.mrf.mxu0
        %514 = vdwg.mxu0
        %515 = vmatprep.subr.mxu0 0.0
        %516 = vmatpush1.msra.mxu0 0.0
        %517 = vmatprep.subr.mxu0 0.0
        %518 = vmatpush1.msra.mxu0 0.0
        %519 = vmatprep.subr.mxu0 0.0
        %520 = vmatpush1.msra.mxu0 0.0
        %521 = vmatprep.subr.mxu0 0.0
        %522 = vmatpush1.msra.mxu0 0.0
        %523 = vmatprep.subr.mxu0 0.0
        %524 = vmatpush1.msra.mxu0 0.0
        %525 = vmatprep.subr.mxu0 0.0
        %526 = vmatpush1.msra.mxu0 0.0
        %527 = vmatprep.subr.mxu0 0.0
        %528 = vmatpush1.msra.mxu0 0.0
        %529 = vmatprep.subr.mxu0 0.0
        %530 = vmatpush1.msra.mxu0 0.0
        %531 = vmatprep.subr.mxu0 0.0
        %532 = vmatpush1.msra.mxu0 0.0
        %533 = vmatprep.subr.mxu0 0.0
        %534 = vmatpush1.msra.mxu0 0.0
        %535 = vmatprep.subr.mxu0 0.0
        %536 = vmatpush1.msra.mxu0 0.0
        %537 = vmatprep.subr.mxu0 0.0
        %538 = vmatpush1.msra.mxu0 0.0
        %539 = vmatprep.subr.mxu0 0.0
        %540 = vmatpush1.msra.mxu0 0.0
        %541 = vmatprep.subr.mxu0 0.0
        %542 = vmatpush1.msra.mxu0 %v434
        %543 = vmatprep.subr.mxu0 0.0
        %544 = vmatpush1.msra.mxu0 %v433
        %545 = vmatprep.subr.mxu0 0.0
        %546 = vmatpush1.msra.mxu0 %v432
        %547 = vmatprep.subr.mxu0 0.0
        %548 = vmatpush2.msra.mxu0 0.0
        %549 = vmatprep.subr.mxu0 0.0
        %550 = vmatpush2.msra.mxu0 0.0
        %551 = vmatprep.subr.mxu0 0.0
        %552 = vmatpush2.msra.mxu0 0.0
        %553 = vmatprep.subr.mxu0 0.0
        %554 = vmatpush2.msra.mxu0 0.0
        %555 = vmatprep.subr.mxu0 0.0
        %556 = vmatpush2.msra.mxu0 0.0
        %557 = vmatprep.subr.mxu0 0.0
        %558 = vmatpush2.msra.mxu0 0.0
        %559 = vmatprep.subr.mxu0 0.0
        %560 = vmatpush2.msra.mxu0 0.0
        %561 = vmatprep.subr.mxu0 0.0
        %562 = vmatpush2.msra.mxu0 0.0
        %563 = vmatprep.subr.mxu0 0.0
        %564 = vmatpush2.msra.mxu0 0.0
        %565 = vmatprep.subr.mxu0 0.0
        %566 = vmatpush2.msra.mxu0 0.0
        %567 = vmatprep.subr.mxu0 0.0
        %568 = vmatpush2.msra.mxu0 0.0
        %569 = vmatprep.subr.mxu0 0.0
        %570 = vmatpush2.msra.mxu0 0.0
        %571 = vmatprep.subr.mxu0 0.0
        %572 = vmatpush2.msra.mxu0 0.0
        %573 = vmatprep.subr.mxu0 0.0
        %574 = vmatpush2.msra.mxu0 0.0
        %575 = vmatprep.subr.mxu0 0.0
        %576 = vmatpush2.msra.mxu0 0.0
        %577 = vmatprep.subr.mxu0 0.0
        %578 = vmatpush2.msra.mxu0 0.0
        %579 = vmatprep.mubr.f32.mxu0 0.0
        %580 = vmatmul.mubr.f32.gmra.mxu0 %v443
        %v581 = vpop.f32.mrf.mxu0
        %v582 = vadd.f32 0.0, %v581
        %v583 = vpop.f32.mrf.mxu0
        %584 = vdwg.mxu0
        %585 = vmatprep.subr.mxu0 0.0
        %586 = vmatpush1.msra.mxu0 0.0
        %587 = vmatprep.subr.mxu0 0.0
        %588 = vmatpush1.msra.mxu0 0.0
        %589 = vmatprep.subr.mxu0 0.0
        %590 = vmatpush1.msra.mxu0 0.0
        %591 = vmatprep.subr.mxu0 0.0
        %592 = vmatpush1.msra.mxu0 0.0
        %593 = vmatprep.subr.mxu0 0.0
        %594 = vmatpush1.msra.mxu0 0.0
        %595 = vmatprep.subr.mxu0 0.0
        %596 = vmatpush1.msra.mxu0 0.0
        %597 = vmatprep.subr.mxu0 0.0
        %598 = vmatpush1.msra.mxu0 0.0
        %599 = vmatprep.subr.mxu0 0.0
        %600 = vmatpush1.msra.mxu0 0.0
        %601 = vmatprep.subr.mxu0 0.0
        %602 = vmatpush1.msra.mxu0 0.0
        %603 = vmatprep.subr.mxu0 0.0
        %604 = vmatpush1.msra.mxu0 0.0
        %605 = vmatprep.subr.mxu0 0.0
        %606 = vmatpush1.msra.mxu0 0.0
        %607 = vmatprep.subr.mxu0 0.0
        %608 = vmatpush1.msra.mxu0 0.0
        %609 = vmatprep.subr.mxu0 0.0
        %610 = vmatpush1.msra.mxu0 0.0
        %611 = vmatprep.subr.mxu0 0.0
        %612 = vmatpush1.msra.mxu0 %v437
        %613 = vmatprep.subr.mxu0 0.0
        %614 = vmatpush1.msra.mxu0 %v436
        %615 = vmatprep.subr.mxu0 0.0
        %616 = vmatpush1.msra.mxu0 %v435
        %617 = vmatprep.subr.mxu0 0.0
        %618 = vmatpush2.msra.mxu0 0.0
        %619 = vmatprep.subr.mxu0 0.0
        %620 = vmatpush2.msra.mxu0 0.0
        %621 = vmatprep.subr.mxu0 0.0
        %622 = vmatpush2.msra.mxu0 0.0
        %623 = vmatprep.subr.mxu0 0.0
        %624 = vmatpush2.msra.mxu0 0.0
        %625 = vmatprep.subr.mxu0 0.0
        %626 = vmatpush2.msra.mxu0 0.0
        %627 = vmatprep.subr.mxu0 0.0
        %628 = vmatpush2.msra.mxu0 0.0
        %629 = vmatprep.subr.mxu0 0.0
        %630 = vmatpush2.msra.mxu0 0.0
        %631 = vmatprep.subr.mxu0 0.0
        %632 = vmatpush2.msra.mxu0 0.0
        %633 = vmatprep.subr.mxu0 0.0
        %634 = vmatpush2.msra.mxu0 0.0
        %635 = vmatprep.subr.mxu0 0.0
        %636 = vmatpush2.msra.mxu0 0.0
        %637 = vmatprep.subr.mxu0 0.0
        %638 = vmatpush2.msra.mxu0 0.0
        %639 = vmatprep.subr.mxu0 0.0
        %640 = vmatpush2.msra.mxu0 0.0
        %641 = vmatprep.subr.mxu0 0.0
        %642 = vmatpush2.msra.mxu0 0.0
        %643 = vmatprep.subr.mxu0 0.0
        %644 = vmatpush2.msra.mxu0 0.0
        %645 = vmatprep.subr.mxu0 0.0
        %646 = vmatpush2.msra.mxu0 0.0
        %647 = vmatprep.subr.mxu0 0.0
        %648 = vmatpush2.msra.mxu0 0.0
        %649 = vmatprep.mubr.f32.mxu0 0.0
        %650 = vmatmul.mubr.f32.gmra.mxu0 %v443
        %v651 = vpop.f32.mrf.mxu0
        %v652 = vadd.f32 0.0, %v651
        %v653 = vpop.f32.mrf.mxu0
        %654 = vdwg.mxu0
        %655 = vmatprep.subr.mxu0 0.0
        %656 = vmatpush1.msra.mxu0 0.0
        %657 = vmatprep.subr.mxu0 0.0
        %658 = vmatpush1.msra.mxu0 0.0
        %659 = vmatprep.subr.mxu0 0.0
        %660 = vmatpush1.msra.mxu0 0.0
        %661 = vmatprep.subr.mxu0 0.0
        %662 = vmatpush1.msra.mxu0 0.0
        %663 = vmatprep.subr.mxu0 0.0
        %664 = vmatpush1.msra.mxu0 0.0
        %665 = vmatprep.subr.mxu0 0.0
        %666 = vmatpush1.msra.mxu0 0.0
        %667 = vmatprep.subr.mxu0 0.0
        %668 = vmatpush1.msra.mxu0 0.0
        %669 = vmatprep.subr.mxu0 0.0
        %670 = vmatpush1.msra.mxu0 0.0
        %671 = vmatprep.subr.mxu0 0.0
        %672 = vmatpush1.msra.mxu0 0.0
        %673 = vmatprep.subr.mxu0 0.0
        %674 = vmatpush1.msra.mxu0 0.0
        %675 = vmatprep.subr.mxu0 0.0
        %676 = vmatpush1.msra.mxu0 0.0
        %677 = vmatprep.subr.mxu0 0.0
        %678 = vmatpush1.msra.mxu0 0.0
        %679 = vmatprep.subr.mxu0 0.0
        %680 = vmatpush1.msra.mxu0 0.0
        %681 = vmatprep.subr.mxu0 0.0
        %682 = vmatpush1.msra.mxu0 %v440
        %683 = vmatprep.subr.mxu0 0.0
        %684 = vmatpush1.msra.mxu0 %v439
        %685 = vmatprep.subr.mxu0 0.0
        %686 = vmatpush1.msra.mxu0 %v438
        %687 = vmatprep.subr.mxu0 0.0
        %688 = vmatpush2.msra.mxu0 0.0
        %689 = vmatprep.subr.mxu0 0.0
        %690 = vmatpush2.msra.mxu0 0.0
        %691 = vmatprep.subr.mxu0 0.0
        %692 = vmatpush2.msra.mxu0 0.0
        %693 = vmatprep.subr.mxu0 0.0
        %694 = vmatpush2.msra.mxu0 0.0
        %695 = vmatprep.subr.mxu0 0.0
        %696 = vmatpush2.msra.mxu0 0.0
        %697 = vmatprep.subr.mxu0 0.0
        %698 = vmatpush2.msra.mxu0 0.0
        %699 = vmatprep.subr.mxu0 0.0
        %700 = vmatpush2.msra.mxu0 0.0
        %701 = vmatprep.subr.mxu0 0.0
        %702 = vmatpush2.msra.mxu0 0.0
        %703 = vmatprep.subr.mxu0 0.0
        %704 = vmatpush2.msra.mxu0 0.0
        %705 = vmatprep.subr.mxu0 0.0
        %706 = vmatpush2.msra.mxu0 0.0
        %707 = vmatprep.subr.mxu0 0.0
        %708 = vmatpush2.msra.mxu0 0.0
        %709 = vmatprep.subr.mxu0 0.0
        %710 = vmatpush2.msra.mxu0 0.0
        %711 = vmatprep.subr.mxu0 0.0
        %712 = vmatpush2.msra.mxu0 0.0
        %713 = vmatprep.subr.mxu0 0.0
        %714 = vmatpush2.msra.mxu0 0.0
        %715 = vmatprep.subr.mxu0 0.0
        %716 = vmatpush2.msra.mxu0 0.0
        %717 = vmatprep.subr.mxu0 0.0
        %718 = vmatpush2.msra.mxu0 0.0
        %719 = vmatprep.mubr.f32.mxu0 0.0
        %720 = vmatmul.mubr.f32.gmra.mxu0 %v443
        %v721 = vpop.f32.mrf.mxu0
        %v722 = vadd.f32 0.0, %v721
        %v723 = vpop.f32.mrf.mxu0
        %724 = vdwg.mxu0
        %725 = vst [vmem:[%s215] sm:$0xff] %v512
        %726 = vst [vmem:[%s215 + $0x8] sm:$0xff] %v582
        %727 = vst [vmem:[%s215 + $0x10] sm:$0xff] %v652
        %728 = vst [vmem:[%s215 + $0x18] sm:$0xff] %v722
        %s729 = sand.u32 %s97, 1
        %s730 = scalar_lea.sflag [#allocation5], %s729
        %s731 = sand.u32 %s97, 1
        %s732 = smul.addr %s731, 32
        %s733 = scalar_lea.vmem [#allocation9], %s732
        // Predicated region
        $region45: #{tpu_custom_call.1} parent=31 // pred_check
          %p734 = pneg %p107
        $region46: #{tpu_custom_call.1} parent=31 // pred_check_branch
          %736 = sbr.rel (%p734) target = $region48
        $region47: #{tpu_custom_call.1} parent=31 // pred_region
          %s737 = smul.u32 4, %s21
          %s739 = ssub.s32 512, 512
          %740 = vsyncadd %s730, %s739
          %s741 = smul.addr %s737, 128
          %s742 = scalar_lea.hbm %s3, %s741
          %s743 = sshll.u32 %s733, 4
          %s744 = int_to_ptr.vmem [resolvable:$true] %s743
          %749 = dma.vmem_to_hbm [thread:$0]  %s744, 512, %s742, %s730, 128, 128, 8
        $region48: #{tpu_custom_call.1} parent=31 // pred_fallthru
          _
      $region32: #{tpu_custom_call.1} parent=5 // pred_fallthru
        _
      %p750 = scmp.le.s32.totalorder 2, %s16
      // Predicated region
      $region49: #{tpu_custom_call.1} parent=5 // pred_check
        %p751 = pneg %p750
      $region50: #{tpu_custom_call.1} parent=5 // pred_check_branch
        %753 = sbr.rel (%p751) target = $region52
      $region51: #{tpu_custom_call.1} parent=5 // pred_region
        %s754 = ssub.s32 %s16, 2
        // Predicated region
        $region53: #{tpu_custom_call.1} parent=51 // pred_check
          %p755 = pneg %p113
        $region54: #{tpu_custom_call.1} parent=51 // pred_check_branch
          %757 = sbr.rel (%p755) target = $region56
        $region55: #{tpu_custom_call.1} parent=51 // pred_region
          %s758 = sand.u32 %s98, 1
          %s759 = scalar_lea.sflag [#allocation5], %s758
          %s760 = sand.u32 %s98, 1
          %s761 = smul.addr %s760, 32
          %s762 = scalar_lea.vmem [#allocation9], %s761
          %763 = dma.done %s759, 512
        $region56: #{tpu_custom_call.1} parent=51 // pred_fallthru
          _
      $region52: #{tpu_custom_call.1} parent=5 // pred_fallthru
        _
    $region6: #{tpu_custom_call.1} parent=1 // loop_footer
      %s20 = sadd.s32 1, %s16
    $region7: #{tpu_custom_call.1} parent=1 // loop_footer_branch
      %15 = sbr.rel target = $region3
    $region8: #{tpu_custom_call.1} parent=1 // loop_exit
      _
    %764 = vsyncpa [#allocation4], 1
    %s765 = scalar_lea.sflag [#allocation4], 1
    %766 = vsyncpa %s765, 1
    %767 = vsyncpa [#allocation7], 1
    %768 = vsyncpa [#allocation5], 1
    %s769 = scalar_lea.sflag [#allocation5], 1
    %770 = vsyncpa %s769, 1

</llo_original>
